<compile_context>
chip_gen: v7x
topology: tpu7x:2x2x1
jax: 0.10.0
libtpu: 0.0.40
codegen_flags: <defaults>
</compile_context>

<pallas_src>
import functools
import math

import numpy as np
import jax
import jax.numpy as jnp
from jax.experimental import pallas as pl
from jax.experimental.pallas import tpu as pltpu

# ----------------------------- small synthetic config -----------------------------
VISION_PATCH_SIZE = 2
VISION_TEMPORAL_PATCH_SIZE = 2
VISION_IN_CHANS = 3
VISION_EMBED_DIM = 32
VISION_DEPTH = 2
VISION_NUM_HEADS = 4
VISION_HEAD_DIM = VISION_EMBED_DIM // VISION_NUM_HEADS      # 8
VISION_MLP_RATIO = 4.0
SPATIAL_MERGE_SIZE = 2
PATCH_DIM = VISION_IN_CHANS * VISION_TEMPORAL_PATCH_SIZE * VISION_PATCH_SIZE * VISION_PATCH_SIZE  # 24

HIDDEN_SIZE = 32          # language model hidden size == merger d_model
NUM_LAYERS = 2
NUM_HEADS = 4
HEAD_DIM = HIDDEN_SIZE // NUM_HEADS                          # 8
INTERMEDIATE_SIZE = 64
VOCAB_SIZE = 128
RMS_EPS = 1e-6
LN_EPS = 1e-6
ROPE_THETA = 10000.0
MROPE_SECTION = (2, 1, 1)                                    # sums to HEAD_DIM // 2
IMAGE_TOKEN_ID = 7
NEG_INF = -1e30

ACT_DTYPE = jnp.bfloat16   # activation / weight storage dtype (f32 accumulation in-kernel)


# --------------------------------- tiling helpers ----------------------------------
def _row_tile(m):
    """Largest legal row tile: whole-M block up to 512 rows, else a divisor multiple of 8."""
    if m <= 512:
        return m
    for t in (512, 256, 128, 64, 32, 16, 8):
        if m % t == 0:
            return t
    return m


def _seq_tile(s):
    """Sequence tile for attention: 128-multiples when they divide S, else the full S."""
    for t in (512, 256, 128):
        if s % t == 0:
            return t
    return s


def _sigmoid(x):
    return 1.0 / (1.0 + jnp.exp(-x))


def _apply_act(y, act):
    if act == "none":
        return y
    if act == "quick_gelu":                      # QuickGELU: x * sigmoid(1.702 x)
        return y * _sigmoid(1.702 * y)
    if act == "gelu":
        # TODO(synk): PyTorch nn.GELU defaults to exact erf; tanh approximation used here.
        c = math.sqrt(2.0 / math.pi)
        return 0.5 * y * (1.0 + jnp.tanh(c * (y + 0.044715 * y * y * y)))
    if act == "silu":
        return y * _sigmoid(y)
    raise ValueError(act)


# ----------------------------------- kernels ---------------------------------------
def fused_norm_linear(x, w, b=None, *, norm="none", norm_w=None, norm_b=None,
                      act="none", residual=None, eps=1e-6, out_dtype=None):
    """(optional norm) -> x @ w (+ b) (+ act) (+ residual), all in one kernel.

    x: (M, K) activations; w: (K, N) bf16 weight; b: (N,) or None; residual: (M, N) or None.
    """
    M, K = x.shape
    N = w.shape[1]
    tm = _row_tile(M)
    out_dtype = out_dtype or x.dtype
    has_bias = b is not None
    has_res = residual is not None

    inputs = [x]
    specs = [pl.BlockSpec((tm, K), lambda i: (i, 0))]
    if norm != "none":
        inputs.append(jnp.reshape(norm_w, (1, K)))
        specs.append(pl.BlockSpec((1, K), lambda i: (0, 0)))
        if norm == "layernorm":
            inputs.append(jnp.reshape(norm_b, (1, K)))
            specs.append(pl.BlockSpec((1, K), lambda i: (0, 0)))
    inputs.append(w)
    specs.append(pl.BlockSpec((K, N), lambda i: (0, 0)))
    if has_bias:
        inputs.append(jnp.reshape(b, (1, N)))
        specs.append(pl.BlockSpec((1, N), lambda i: (0, 0)))
    if has_res:
        inputs.append(residual)
        specs.append(pl.BlockSpec((tm, N), lambda i: (i, 0)))

    def kernel(*refs):
        idx = 0
        x_ref = refs[idx]; idx += 1
        nw_ref = nb_ref = None
        if norm != "none":
            nw_ref = refs[idx]; idx += 1
            if norm == "layernorm":
                nb_ref = refs[idx]; idx += 1
        w_ref = refs[idx]; idx += 1
        b_ref = None
        if has_bias:
            b_ref = refs[idx]; idx += 1
        r_ref = None
        if has_res:
            r_ref = refs[idx]; idx += 1
        o_ref = refs[idx]

        xf = x_ref[...].astype(jnp.float32)
        h = xf
        if norm == "rmsnorm":
            var = jnp.mean(h * h, axis=-1, keepdims=True)
            h = h * jax.lax.rsqrt(var + eps) * nw_ref[...].astype(jnp.float32)
        elif norm == "layernorm":
            mean = jnp.mean(h, axis=-1, keepdims=True)
            hc = h - mean
            var = jnp.mean(hc * hc, axis=-1, keepdims=True)
            h = hc * jax.lax.rsqrt(var + eps) * nw_ref[...].astype(jnp.float32) \
                + nb_ref[...].astype(jnp.float32)
        # bf16 MXU inputs, f32 accumulation
        y = jnp.dot(h.astype(w_ref.dtype), w_ref[...], preferred_element_type=jnp.float32)
        if has_bias:
            y = y + b_ref[...].astype(jnp.float32)
        y = _apply_act(y, act)
        if has_res:
            y = y + r_ref[...].astype(jnp.float32)
        o_ref[...] = y.astype(o_ref.dtype)

    return pl.pallas_call(
        kernel,
        out_shape=jax.ShapeDtypeStruct((M, N), out_dtype),
        grid=(M // tm,),
        in_specs=specs,
        out_specs=pl.BlockSpec((tm, N), lambda i: (i, 0)),
        compiler_params=pltpu.CompilerParams(dimension_semantics=("parallel",)),
    )(*inputs)


def gated_mlp(x, norm_w, wg, wu, wd, *, eps=RMS_EPS):
    """Qwen2 MLP fused: rmsnorm -> gate/up matmuls -> silu(gate)*up -> down -> + residual."""
    M, K = x.shape
    I = wg.shape[1]
    tm = _row_tile(M)

    def kernel(x_ref, nw_ref, wg_ref, wu_ref, wd_ref, o_ref):
        xf = x_ref[...].astype(jnp.float32)
        var = jnp.mean(xf * xf, axis=-1, keepdims=True)
        h = (xf * jax.lax.rsqrt(var + eps) * nw_ref[...].astype(jnp.float32)).astype(wg_ref.dtype)
        g = jnp.dot(h, wg_ref[...], preferred_element_type=jnp.float32)
        u = jnp.dot(h, wu_ref[...], preferred_element_type=jnp.float32)
        a = (g * _sigmoid(g) * u).astype(wd_ref.dtype)
        y = jnp.dot(a, wd_ref[...], preferred_element_type=jnp.float32) + xf  # residual
        o_ref[...] = y.astype(o_ref.dtype)

    return pl.pallas_call(
        kernel,
        out_shape=jax.ShapeDtypeStruct((M, K), x.dtype),
        grid=(M // tm,),
        in_specs=[
            pl.BlockSpec((tm, K), lambda i: (i, 0)),
            pl.BlockSpec((1, K), lambda i: (0, 0)),
            pl.BlockSpec((K, I), lambda i: (0, 0)),
            pl.BlockSpec((K, I), lambda i: (0, 0)),
            pl.BlockSpec((I, K), lambda i: (0, 0)),
        ],
        out_specs=pl.BlockSpec((tm, K), lambda i: (i, 0)),
        compiler_params=pltpu.CompilerParams(dimension_semantics=("parallel",)),
    )(x, jnp.reshape(norm_w, (1, K)), wg, wu, wd)


def mlp(x, w1, b1, w2, b2, *, norm="none", norm_w=None, norm_b=None,
        act="gelu", add_residual=False, eps=LN_EPS, out_dtype=None):
    """(optional layernorm) -> fc1 (+b1) -> act -> fc2 (+b2) (-> + residual) in one kernel."""
    M, K = x.shape
    H1 = w1.shape[1]
    N = w2.shape[1]
    tm = _row_tile(M)
    out_dtype = out_dtype or x.dtype

    inputs = [x]
    specs = [pl.BlockSpec((tm, K), lambda i: (i, 0))]
    if norm != "none":
        inputs += [jnp.reshape(norm_w, (1, K)), jnp.reshape(norm_b, (1, K))]
        specs += [pl.BlockSpec((1, K), lambda i: (0, 0)),
                  pl.BlockSpec((1, K), lambda i: (0, 0))]
    inputs += [w1, jnp.reshape(b1, (1, H1)), w2, jnp.reshape(b2, (1, N))]
    specs += [pl.BlockSpec((K, H1), lambda i: (0, 0)),
              pl.BlockSpec((1, H1), lambda i: (0, 0)),
              pl.BlockSpec((H1, N), lambda i: (0, 0)),
              pl.BlockSpec((1, N), lambda i: (0, 0))]

    def kernel(*refs):
        idx = 0
        x_ref = refs[idx]; idx += 1
        nw_ref = nb_ref = None
        if norm != "none":
            nw_ref = refs[idx]; idx += 1
            nb_ref = refs[idx]; idx += 1
        w1_ref = refs[idx]; idx += 1
        b1_ref = refs[idx]; idx += 1
        w2_ref = refs[idx]; idx += 1
        b2_ref = refs[idx]; idx += 1
        o_ref = refs[idx]

        xf = x_ref[...].astype(jnp.float32)
        h = xf
        if norm == "layernorm":
            mean = jnp.mean(h, axis=-1, keepdims=True)
            hc = h - mean
            var = jnp.mean(hc * hc, axis=-1, keepdims=True)
            h = hc * jax.lax.rsqrt(var + eps) * nw_ref[...].astype(jnp.float32) \
                + nb_ref[...].astype(jnp.float32)
        a = jnp.dot(h.astype(w1_ref.dtype), w1_ref[...], preferred_element_type=jnp.float32)
        a = a + b1_ref[...].astype(jnp.float32)
        a = _apply_act(a, act)
        y = jnp.dot(a.astype(w2_ref.dtype), w2_ref[...], preferred_element_type=jnp.float32)
        y = y + b2_ref[...].astype(jnp.float32)
        if add_residual:
            y = y + xf
        o_ref[...] = y.astype(o_ref.dtype)

    return pl.pallas_call(
        kernel,
        out_shape=jax.ShapeDtypeStruct((M, N), out_dtype),
        grid=(M // tm,),
        in_specs=specs,
        out_specs=pl.BlockSpec((tm, N), lambda i: (i, 0)),
        compiler_params=pltpu.CompilerParams(dimension_semantics=("parallel",)),
    )(*inputs)


def layernorm(x, w, b, eps=LN_EPS):
    """Standalone layernorm (only used for the patch-merger ln_q, which is followed by a reshape)."""
    M, D = x.shape
    tm = _row_tile(M)

    def kernel(x_ref, w_ref, b_ref, o_ref):
        xf = x_ref[...].astype(jnp.float32)
        mean = jnp.mean(xf, axis=-1, keepdims=True)
        xc = xf - mean
        var = jnp.mean(xc * xc, axis=-1, keepdims=True)
        y = xc * jax.lax.rsqrt(var + eps) * w_ref[...].astype(jnp.float32) \
            + b_ref[...].astype(jnp.float32)
        o_ref[...] = y.astype(o_ref.dtype)

    return pl.pallas_call(
        kernel,
        out_shape=jax.ShapeDtypeStruct((M, D), x.dtype),
        grid=(M // tm,),
        in_specs=[pl.BlockSpec((tm, D), lambda i: (i, 0)),
                  pl.BlockSpec((1, D), lambda i: (0, 0)),
                  pl.BlockSpec((1, D), lambda i: (0, 0))],
        out_specs=pl.BlockSpec((tm, D), lambda i: (i, 0)),
        compiler_params=pltpu.CompilerParams(dimension_semantics=("parallel",)),
    )(x, jnp.reshape(w, (1, D)), jnp.reshape(b, (1, D)))


def _flash_attn_kernel(q_ref, k_ref, v_ref, cq_ref, sq_ref, ck_ref, sk_ref,
                       segq_ref, segk_ref, o_ref, m_scr, l_scr, acc_scr,
                       *, scale, causal):
    """Online-softmax attention tile. Rotary + mask built in-kernel; no S x S materialization."""
    qi = pl.program_id(0)
    ki = pl.program_id(1)
    tq = q_ref.shape[1]
    tk = k_ref.shape[1]

    @pl.when(ki == 0)
    def _():
        m_scr[...] = jnp.full_like(m_scr, NEG_INF)
        l_scr[...] = jnp.zeros_like(l_scr)
        acc_scr[...] = jnp.zeros_like(acc_scr)

    def rope(x, cos_ref, sin_ref):
        # NeoX rotary on full head_dim; halves sliced on VMEM-resident values only.
        xf = x.astype(jnp.float32)
        half = xf.shape[-1] // 2
        x1 = xf[..., :half]
        x2 = xf[..., half:]
        rot = jnp.concatenate([-x2, x1], axis=-1)
        c = cos_ref[...].astype(jnp.float32)[None]
        s = sin_ref[...].astype(jnp.float32)[None]
        return xf * c + rot * s

    qr = rope(q_ref[...], cq_ref, sq_ref) * scale
    kr = rope(k_ref[...], ck_ref, sk_ref)
    v = v_ref[...]

    # bf16 MXU inputs, f32 accumulation.
    s = jnp.einsum("hqd,hkd->hqk", qr.astype(jnp.bfloat16), kr.astype(jnp.bfloat16),
                   preferred_element_type=jnp.float32)

    # Mask generated in-kernel: segment (block-diagonal) and optionally causal.
    seg_ok = segq_ref[...] == segk_ref[...]                     # (tq,1)==(1,tk) -> (tq,tk)
    if causal:
        qpos = qi * tq + jax.lax.broadcasted_iota(jnp.int32, (tq, tk), 0)
        kpos = ki * tk + jax.lax.broadcasted_iota(jnp.int32, (tq, tk), 1)
        seg_ok = jnp.logical_and(seg_ok, kpos <= qpos)
    s = jnp.where(seg_ok[None, :, :], s, NEG_INF)

    m_prev = m_scr[...]
    m_new = jnp.maximum(m_prev, jnp.max(s, axis=-1, keepdims=True))
    alpha = jnp.exp(m_prev - m_new)
    p = jnp.exp(s - m_new)
    l_scr[...] = alpha * l_scr[...] + jnp.sum(p, axis=-1, keepdims=True)
    acc_scr[...] = alpha * acc_scr[...] + jnp.einsum(
        "hqk,hkd->hqd", p.astype(v.dtype), v, preferred_element_type=jnp.float32)
    m_scr[...] = m_new

    @pl.when(ki == pl.num_programs(1) - 1)
    def _():
        inv_l = pl.reciprocal(l_scr[...], approx=True)
        o_ref[...] = (acc_scr[...] * inv_l).astype(o_ref.dtype)


def attention(q, k, v, cos, sin, seg, *, causal):
    """q, k, v: (H, S, Dh); cos/sin: (S, Dh) full-dim; seg: (S,) int32 segment ids."""
    H, S, Dh = q.shape
    scale = 1.0 / math.sqrt(Dh)
    tq = _seq_tile(S)
    tk = _seq_tile(S)
    seg_col = jnp.reshape(seg, (S, 1)).astype(jnp.int32)
    seg_row = jnp.reshape(seg, (1, S)).astype(jnp.int32)

    kernel = functools.partial(_flash_attn_kernel, scale=scale, causal=causal)
    return pl.pallas_call(
        kernel,
        out_shape=jax.ShapeDtypeStruct((H, S, Dh), q.dtype),
        grid=(S // tq, S // tk),
        in_specs=[
            pl.BlockSpec((H, tq, Dh), lambda qi, ki: (0, qi, 0)),   # q
            pl.BlockSpec((H, tk, Dh), lambda qi, ki: (0, ki, 0)),   # k
            pl.BlockSpec((H, tk, Dh), lambda qi, ki: (0, ki, 0)),   # v
            pl.BlockSpec((tq, Dh), lambda qi, ki: (qi, 0)),         # cos (q rows)
            pl.BlockSpec((tq, Dh), lambda qi, ki: (qi, 0)),         # sin (q rows)
            pl.BlockSpec((tk, Dh), lambda qi, ki: (ki, 0)),         # cos (k rows)
            pl.BlockSpec((tk, Dh), lambda qi, ki: (ki, 0)),         # sin (k rows)
            pl.BlockSpec((tq, 1), lambda qi, ki: (qi, 0)),          # segment ids (q)
            pl.BlockSpec((1, tk), lambda qi, ki: (0, ki)),          # segment ids (k)
        ],
        out_specs=pl.BlockSpec((H, tq, Dh), lambda qi, ki: (0, qi, 0)),
        scratch_shapes=[
            pltpu.VMEM((H, tq, 1), jnp.float32),     # running max
            pltpu.VMEM((H, tq, 1), jnp.float32),     # running sum
            pltpu.VMEM((H, tq, Dh), jnp.float32),    # accumulator
        ],
        compiler_params=pltpu.CompilerParams(
            dimension_semantics=("parallel", "arbitrary")),
    )(q, k, v, cos, sin, cos, sin, seg_col, seg_row)


# ------------------------------- glue (numpy side) --------------------------------
def vision_rot_pos_emb(grid_thw):
    """Mirrors Qwen2VisionTransformer.rot_pos_emb. Returns full-dim cos/sin (L, head_dim)."""
    sm = SPATIAL_MERGE_SIZE
    pos_ids = []
    for t, h, w in grid_thw:
        hpos = np.broadcast_to(np.arange(h)[:, None], (h, w))
        wpos = np.broadcast_to(np.arange(w)[None, :], (h, w))
        hpos = hpos.reshape(h // sm, sm, w // sm, sm).transpose(0, 2, 1, 3).reshape(-1)
        wpos = wpos.reshape(h // sm, sm, w // sm, sm).transpose(0, 2, 1, 3).reshape(-1)
        pid = np.stack([hpos, wpos], axis=-1)
        pos_ids.append(np.tile(pid, (t, 1)))
    pos_ids = np.concatenate(pos_ids, axis=0)                     # (L, 2)
    max_grid = int(np.max(np.asarray(grid_thw)[:, 1:]))
    dim = VISION_HEAD_DIM // 2                                    # rotary emb dim
    inv_freq = 1.0 / (10000.0 ** (np.arange(0, dim, 2, dtype=np.float32) / dim))
    freqs = np.outer(np.arange(max_grid, dtype=np.float32), inv_freq)
    rpe = freqs[pos_ids].reshape(pos_ids.shape[0], -1)            # (L, head_dim//2)
    emb = np.concatenate([rpe, rpe], axis=-1)                     # (L, head_dim)
    return np.cos(emb).astype(np.float32), np.sin(emb).astype(np.float32)


def vision_segment_ids(grid_thw):
    """Per-frame segment ids (equivalent to cu_seqlens block-diagonal masking)."""
    segs, sid = [], 0
    for t, h, w in grid_thw:
        for _ in range(t):
            segs.append(np.full(h * w, sid, dtype=np.int32))
            sid += 1
    return np.concatenate(segs)


def mrope_cos_sin(positions):
    """positions: (3, S) int -> full-dim cos/sin (S, HEAD_DIM) using mrope_section."""
    inv_freq = 1.0 / (ROPE_THETA ** (np.arange(0, HEAD_DIM, 2, dtype=np.float32) / HEAD_DIM))
    freqs = positions[:, :, None].astype(np.float32) * inv_freq[None, None, :]   # (3, S, hd/2)
    cos, sin = np.cos(freqs), np.sin(freqs)
    splits = np.cumsum(np.asarray(MROPE_SECTION))[:-1]
    cos_parts = np.split(cos, splits, axis=-1)
    sin_parts = np.split(sin, splits, axis=-1)
    cos_h = np.concatenate([cos_parts[i][i] for i in range(3)], axis=-1)
    sin_h = np.concatenate([sin_parts[i][i] for i in range(3)], axis=-1)
    cos_f = np.concatenate([cos_h, cos_h], axis=-1)               # (S, HEAD_DIM)
    sin_f = np.concatenate([sin_h, sin_h], axis=-1)
    return cos_f.astype(np.float32), sin_f.astype(np.float32)


# ------------------------------- model forward ------------------------------------
def vision_forward(vp, pixel_values, grid_thw):
    # Qwen2VisionPatchEmbed: Conv3d(stride==kernel) == matmul over flattened patches.
    x = fused_norm_linear(pixel_values, vp["patch_embed_w"])       # (L, embed_dim)
    L = x.shape[0]

    cos_np, sin_np = vision_rot_pos_emb(grid_thw)
    cos, sin = jnp.asarray(cos_np), jnp.asarray(sin_np)
    seg = jnp.asarray(vision_segment_ids(grid_thw))

    for blk in vp["blocks"]:
        # layernorm fused into the QKV matmul
        qkv = fused_norm_linear(x, blk["qkv_w"], blk["qkv_b"],
                                norm="layernorm", norm_w=blk["norm1_w"],
                                norm_b=blk["norm1_b"], eps=LN_EPS)
        q, k, v = jnp.split(qkv, 3, axis=-1)

        def to_heads(t):
            return t.reshape(L, VISION_NUM_HEADS, VISION_HEAD_DIM).transpose(1, 0, 2)

        o = attention(to_heads(q), to_heads(k), to_heads(v), cos, sin, seg, causal=False)
        o = o.transpose(1, 0, 2).reshape(L, VISION_EMBED_DIM)
        # projection + residual fused
        x = fused_norm_linear(o, blk["proj_w"], blk["proj_b"], residual=x)
        # layernorm + fc1 + QuickGELU + fc2 + residual fused
        x = mlp(x, blk["fc1_w"], blk["fc1_b"], blk["fc2_w"], blk["fc2_b"],
                norm="layernorm", norm_w=blk["norm2_w"], norm_b=blk["norm2_b"],
                act="quick_gelu", add_residual=True, eps=LN_EPS)

    # Qwen2VisionPatchMerger: ln_q, reshape, fc1 + GELU + fc2 (fused MLP kernel)
    y = layernorm(x, vp["merger_ln_w"], vp["merger_ln_b"])
    y = y.reshape(-1, VISION_EMBED_DIM * SPATIAL_MERGE_SIZE ** 2)
    y = mlp(y, vp["merger_fc1_w"], vp["merger_fc1_b"], vp["merger_fc2_w"], vp["merger_fc2_b"],
            norm="none", act="gelu", add_residual=False)
    return y                                                        # (L/4, HIDDEN_SIZE)


def language_forward(mp, inputs_embeds, cos, sin, seg):
    x = inputs_embeds
    S = x.shape[0]
    for layer in mp["layers"]:
        # rmsnorm fused into the single fused-QKV matmul
        qkv = fused_norm_linear(x, layer["qkv_w"], layer["qkv_b"],
                                norm="rmsnorm", norm_w=layer["input_ln_w"], eps=RMS_EPS)
        q, k, v = jnp.split(qkv, 3, axis=-1)

        def to_heads(t):
            return t.reshape(S, NUM_HEADS, HEAD_DIM).transpose(1, 0, 2)

        o = attention(to_heads(q), to_heads(k), to_heads(v), cos, sin, seg, causal=True)
        o = o.transpose(1, 0, 2).reshape(S, HIDDEN_SIZE)
        # o_proj + residual fused (no bias in Qwen2 o_proj -> bias path skipped at trace time)
        x = fused_norm_linear(o, layer["o_w"], None, residual=x)
        # rmsnorm + gate/up + silu*up + down + residual fused
        x = gated_mlp(x, layer["post_ln_w"], layer["gate_w"], layer["up_w"],
                      layer["down_w"], eps=RMS_EPS)
    return x   # final rmsnorm is fused into the lm_head kernel


def qwen2vl_forward(params, input_ids, image_positions, pixel_values, grid_thw,
                    mrope_positions):
    # 1) vision tower -> image embeddings
    image_embeds = vision_forward(params["visual"], pixel_values.astype(ACT_DTYPE), grid_thw)

    # 2) embed tokens and scatter image embeddings at image-token positions
    embed_tokens = params["model"]["embed_tokens"]
    inputs_embeds = embed_tokens[input_ids]
    inputs_embeds = inputs_embeds.at[image_positions].set(
        image_embeds.astype(inputs_embeds.dtype))

    # 3) language model with mrope (3, seq_len) positions; causal mask built in-kernel
    cos_np, sin_np = mrope_cos_sin(mrope_positions)
    S = input_ids.shape[0]
    seg = jnp.zeros((S,), jnp.int32)
    hidden = language_forward(params["model"], inputs_embeds,
                              jnp.asarray(cos_np), jnp.asarray(sin_np), seg)

    # 4) logits for the final position: final rmsnorm + tied lm_head (pre-transposed) fused
    # TODO(synk): LogitsProcessor / Pooler batching machinery reduced to last-token logits.
    last = hidden[-1:]
    logits = fused_norm_linear(last, params["model"]["lm_head_w"], None,
                               norm="rmsnorm", norm_w=params["model"]["norm_w"],
                               eps=RMS_EPS, out_dtype=jnp.float32)
    return logits


# ------------------------------ parameter init ------------------------------------
class KeyGen:
    def __init__(self, seed):
        self._key = jax.random.PRNGKey(seed)

    def __call__(self):
        self._key, sub = jax.random.split(self._key)
        return sub


def init_params(kg):
    def bw(shape, scale=0.02):   # bf16 matmul weights (MXU-native)
        return (jax.random.normal(kg(), shape, dtype=jnp.float32) * scale).astype(ACT_DTYPE)

    def fw(shape, scale=0.02):   # f32 biases / norm params
        return jax.random.normal(kg(), shape, dtype=jnp.float32) * scale

    def ones_ish(n):
        return 1.0 + 0.01 * jax.random.normal(kg(), (n,), dtype=jnp.float32)

    mlp_hidden = int(VISION_EMBED_DIM * VISION_MLP_RATIO)
    merge_dim = VISION_EMBED_DIM * SPATIAL_MERGE_SIZE ** 2

    visual = {
        "patch_embed_w": bw((PATCH_DIM, VISION_EMBED_DIM)),
        "blocks": [
            {
                "norm1_w": ones_ish(VISION_EMBED_DIM), "norm1_b": fw((VISION_EMBED_DIM,)),
                "qkv_w": bw((VISION_EMBED_DIM, 3 * VISION_EMBED_DIM)),
                "qkv_b": fw((3 * VISION_EMBED_DIM,)),
                "proj_w": bw((VISION_EMBED_DIM, VISION_EMBED_DIM)),
                "proj_b": fw((VISION_EMBED_DIM,)),
                "norm2_w": ones_ish(VISION_EMBED_DIM), "norm2_b": fw((VISION_EMBED_DIM,)),
                "fc1_w": bw((VISION_EMBED_DIM, mlp_hidden)), "fc1_b": fw((mlp_hidden,)),
                "fc2_w": bw((mlp_hidden, VISION_EMBED_DIM)), "fc2_b": fw((VISION_EMBED_DIM,)),
            }
            for _ in range(VISION_DEPTH)
        ],
        "merger_ln_w": ones_ish(VISION_EMBED_DIM), "merger_ln_b": fw((VISION_EMBED_DIM,)),
        "merger_fc1_w": bw((merge_dim, merge_dim)), "merger_fc1_b": fw((merge_dim,)),
        "merger_fc2_w": bw((merge_dim, HIDDEN_SIZE)), "merger_fc2_b": fw((HIDDEN_SIZE,)),
    }

    embed_f32 = fw((VOCAB_SIZE, HIDDEN_SIZE))
    model = {
        "embed_tokens": embed_f32.astype(ACT_DTYPE),
        # tied lm_head, pre-transposed ONCE at init (no runtime embed_tokens.T)
        "lm_head_w": jnp.transpose(embed_f32).astype(ACT_DTYPE),
        "layers": [
            {
                "input_ln_w": ones_ish(HIDDEN_SIZE),
                # q/k/v fused into one (HIDDEN, 3*HIDDEN) weight
                "qkv_w": bw((HIDDEN_SIZE, 3 * HIDDEN_SIZE)),
                "qkv_b": fw((3 * HIDDEN_SIZE,)),
                "o_w": bw((HIDDEN_SIZE, HIDDEN_SIZE)),
                "post_ln_w": ones_ish(HIDDEN_SIZE),
                "gate_w": bw((HIDDEN_SIZE, INTERMEDIATE_SIZE)),
                "up_w": bw((HIDDEN_SIZE, INTERMEDIATE_SIZE)),
                "down_w": bw((INTERMEDIATE_SIZE, HIDDEN_SIZE)),
            }
            for _ in range(NUM_LAYERS)
        ],
        "norm_w": ones_ish(HIDDEN_SIZE),
    }
    return {"visual": visual, "model": model}


# ------------------------------------ main -----------------------------------------
if __name__ == "__main__":
    kg = KeyGen(0)
    params = init_params(kg)

    # two small "images": grid_thw = (t=1, h=4, w=4) each -> 32 patches, 8 merged tokens
    grid_thw = np.array([[1, 4, 4], [1, 4, 4]], dtype=np.int32)
    num_patches = int(np.sum(grid_thw[:, 0] * grid_thw[:, 1] * grid_thw[:, 2]))   # 32
    pixel_values = jax.random.normal(kg(), (num_patches, PATCH_DIM), dtype=jnp.float32)

    num_image_tokens = num_patches // (SPATIAL_MERGE_SIZE ** 2)                   # 8
    seq_len = 24
    # np.array(...) makes a writable host copy (np.asarray on a jax array is read-only).
    input_ids_np = np.array(
        jax.random.randint(kg(), (seq_len,), 0, VOCAB_SIZE, dtype=jnp.int32))
    image_positions_np = np.arange(3, 3 + num_image_tokens, dtype=np.int32)
    input_ids_np[image_positions_np] = IMAGE_TOKEN_ID

    # mrope positions: shape (3, seq_len) = (temporal, height, width) position streams
    base = np.arange(seq_len, dtype=np.int32)
    mrope_positions = np.stack([base.copy(), base.copy(), base.copy()])
    mrope_positions[1, 3:3 + num_image_tokens] = np.array([3, 3, 4, 4, 3, 3, 4, 4])
    mrope_positions[2, 3:3 + num_image_tokens] = np.array([3, 4, 3, 4, 3, 4, 3, 4])

    logits = qwen2vl_forward(
        params,
        jnp.asarray(input_ids_np),
        jnp.asarray(image_positions_np),
        pixel_values,
        grid_thw,
        mrope_positions,
    )
    logits = jax.block_until_ready(logits)
    assert logits.shape == (1, VOCAB_SIZE)
    assert bool(jnp.all(jnp.isfinite(logits)))
    print("KERNEL_OK")
</pallas_src>

<mosaic_0001>
module attributes {stable_mosaic.version = 11 : i64} {
  func.func @kernel(%arg0: i32, %arg1: memref<32x24xbf16, #tpu.memory_space<vmem>>, %arg2: memref<24x32xbf16, #tpu.memory_space<vmem>>, %arg3: memref<32x32xbf16, #tpu.memory_space<vmem>>) attributes {dimension_semantics = [#tpu.dimension_semantics<parallel>], iteration_bounds = array<i64: 1>, scalar_prefetch = 0 : i64, scratch_operands = 0 : i64, tpu.core_type = #tpu.core_type<tc>, window_params = [{transform_indices = @transform_0, window_bounds = array<i64: 32, 24>}, {pipeline_mode = #tpu.pipeline_mode<synchronous>, transform_indices = @transform_1, window_bounds = array<i64: 24, 32>}, {transform_indices = @transform_2, window_bounds = array<i64: 32, 32>}]} {
    %c0 = arith.constant 0 : index
    %c0_0 = arith.constant 0 : index
    %0 = vector.load %arg1[%c0, %c0_0] : memref<32x24xbf16, #tpu.memory_space<vmem>>, vector<32x24xbf16>
    %1 = arith.extf %0 : vector<32x24xbf16> to vector<32x24xf32>
    %2 = arith.truncf %1 : vector<32x24xf32> to vector<32x24xbf16>
    %c0_1 = arith.constant 0 : index
    %c0_2 = arith.constant 0 : index
    %3 = vector.load %arg2[%c0_1, %c0_2] : memref<24x32xbf16, #tpu.memory_space<vmem>>, vector<24x32xbf16>
    %cst = arith.constant dense<0.000000e+00> : vector<32x32xf32>
    %4 = tpu.matmul %2, %3, %cst {dimension_numbers = #tpu.dot_dimension_numbers<[1], [0], [0], [1], [0, 0, 1, 1], [], []>} : vector<32x24xbf16>, vector<24x32xbf16>, vector<32x32xf32> -> vector<32x32xf32>
    %5 = arith.truncf %4 : vector<32x32xf32> to vector<32x32xbf16>
    %c0_3 = arith.constant 0 : index
    %c0_4 = arith.constant 0 : index
    %6 = vector.load %arg3[%c0_3, %c0_4] : memref<32x32xbf16, #tpu.memory_space<vmem>>, vector<32x32xbf16>
    tpu.vector_store %arg3[%c0_3, %c0_4], %5 {strides = array<i32>} : memref<32x32xbf16, #tpu.memory_space<vmem>>, vector<32x32xbf16>,
    return
  }
  func.func @transform_0(%arg0: i32) -> (i32, i32) {
    %c0_i32 = arith.constant 0 : i32
    %c0_i32_0 = arith.constant 0 : i32
    return %arg0, %c0_i32 : i32, i32
  }
  func.func @transform_1(%arg0: i32) -> (i32, i32) {
    %c0_i32 = arith.constant 0 : i32
    %c0_i32_0 = arith.constant 0 : i32
    %c0_i32_1 = arith.constant 0 : i32
    return %c0_i32, %c0_i32_0 : i32, i32
  }
  func.func @transform_2(%arg0: i32) -> (i32, i32) {
    %c0_i32 = arith.constant 0 : i32
    %c0_i32_0 = arith.constant 0 : i32
    return %arg0, %c0_i32 : i32, i32
  }
}

</mosaic_0001>

<llo_original>
// kernel: tpu_custom_call.1
$region0: #{tpu_custom_call.1}
  #allocation0 [shape = 'u32[]', space=smem, size = 0x4, offset = 0x4, fixed_abs, tag = 'smem constant byte address 0x4 - core index']
  #allocation1 [shape = 'u32[144,128]{1,0:T(1,128)}', space=vmem, size = 0x12000, scoped, tag = 'internal scratch']
  %s0 = inlined_call_operand.vmem [shape: bf16[32,24], index: 0, kind: input, shape index: {}]
  %s1 = inlined_call_operand.vmem [shape: bf16[24,32], index: 1, kind: input, shape index: {}]
  %s2 = inlined_call_operand.hbm [shape: bf16[32,32], index: 2, kind: output, shape index: {}]
  %s3 = sld [smem:[#allocation0]]
  $region18: #{tpu_custom_call.1} parent=0
    _
  %s5 = ssub.s32 1, %s3
  %s6 = scalar_select 0, %s5, %s3
  $region1: #{tpu_custom_call.1} parent=0
    #allocation2 [shape = 'u8[8192]{0}', space=vmem, size = 0x2000, scoped, tag = 'output window, operand 0, single buffered']
    #allocation3 [shape = 's32[1]{0}', space=sflag, size = 0x4, scoped, tag = 'scoped memory for tpu_custom_call.1']
    %7 = vsyncpa [#allocation3], 0
    // Predicated region
    $region2: #{tpu_custom_call.1} parent=1 // pred_check
      _
    $region3: #{tpu_custom_call.1} parent=1 // pred_check_branch
      %9 = sbr.rel (0) target = $region5
    $region4: #{tpu_custom_call.1} parent=1 // pred_region
      _
    $region5: #{tpu_custom_call.1} parent=1 // pred_fallthru
      _
    // Predicated region
    $region6: #{tpu_custom_call.1} parent=1 // pred_check
      _
    $region7: #{tpu_custom_call.1} parent=1 // pred_check_branch
      %11 = sbr.rel (0) target = $region9
    $region8: #{tpu_custom_call.1} parent=1 // pred_region
      _
    $region9: #{tpu_custom_call.1} parent=1 // pred_fallthru
      _
    %v13 = vld [vmem:[%s0] sm:$0xf]
    %v14 = vld [vmem:[%s0 + $0x4] sm:$0xf]
    %v15 = vld [vmem:[%s0 + $0x8] sm:$0xf]
    %v16 = vld [vmem:[%s0 + $0xc] sm:$0xf]
    %v17 = vld [vmem:[%s1] sm:$0xf]
    %v18 = vld [vmem:[%s1 + $0x4] sm:$0xf]
    %v19 = vld [vmem:[%s1 + $0x8] sm:$0xf]
    %v24 = vunpack.c.l.b16 %v13
    %v25 = vunpack.c.l.b16 %v14
    %v26 = vunpack.c.l.b16 %v15
    %v27 = vunpack.c.l.b16 %v16
    %v28 = vpack.c.b16 %v25, %v24
    %v29 = vpack.c.b16 %v27, %v26
    %v33 = vunpack.c.l.b16 %v17
    %v34 = vunpack.c.l.b16 %v18
    %v35 = vunpack.c.l.b16 %v19
    %v36 = vpack.c.b16 %v34, %v33
    %v37 = vpack.c.b16 %v35, %v35
    %vm39 = vcmask 195584
    %v41 = vsel %vm39, %v28, 0
    %v44 = vsel %vm39, %v29, 0
    %vm46 = vcmask 1043456
    %v48 = vsel %vm46, %v37, 0
    %50 = vmatprep.subr.bf16.mxu0 0
    %51 = vmatpush1.bf16.msra.mxu0 %v36
    %52 = vmatprep.subr.bf16.mxu0 0
    %53 = vmatpush1.bf16.msra.mxu0 %v48
    %54 = vmatprep.subr.bf16.mxu0 0
    %55 = vmatpush1.bf16.msra.mxu0 0
    %56 = vmatprep.subr.bf16.mxu0 0
    %57 = vmatpush1.bf16.msra.mxu0 0
    %58 = vmatprep.subr.bf16.mxu0 0
    %59 = vmatpush1.bf16.msra.mxu0 0
    %60 = vmatprep.subr.bf16.mxu0 0
    %61 = vmatpush1.bf16.msra.mxu0 0
    %62 = vmatprep.subr.bf16.mxu0 0
    %63 = vmatpush1.bf16.msra.mxu0 0
    %64 = vmatprep.subr.bf16.mxu0 0
    %65 = vmatpush1.bf16.msra.mxu0 0
    %66 = vmatprep.subr.bf16.mxu0 0
    %67 = vmatpush1.bf16.msra.mxu0 0
    %68 = vmatprep.subr.bf16.mxu0 0
    %69 = vmatpush1.bf16.msra.mxu0 0
    %70 = vmatprep.subr.bf16.mxu0 0
    %71 = vmatpush1.bf16.msra.mxu0 0
    %72 = vmatprep.subr.bf16.mxu0 0
    %73 = vmatpush1.bf16.msra.mxu0 0
    %74 = vmatprep.subr.bf16.mxu0 0
    %75 = vmatpush1.bf16.msra.mxu0 0
    %76 = vmatprep.subr.bf16.mxu0 0
    %77 = vmatpush1.bf16.msra.mxu0 0
    %78 = vmatprep.subr.bf16.mxu0 0
    %79 = vmatpush1.bf16.msra.mxu0 0
    %80 = vmatprep.subr.bf16.mxu0 0
    %81 = vmatpush1.bf16.msra.mxu0 0
    %82 = vmatprep.mubr.bf16.mxu0 0
    %83 = vmatmul.mubr.bf16.gmra.mrb[0].mxu0 %v41
    %v84 = vpop.f32.mrb[0].mxu0
    %v85 = vadd.f32 0.0, %v84
    %v86 = vpop.f32.mrb[0].mxu0
    %v87 = vpop.f32.mrb[0].mxu0
    %v88 = vadd.f32 0.0, %v87
    %v89 = vpop.f32.mrb[0].mxu0
    %90 = vmatprep.mubr.bf16.mxu0 0
    %91 = vmatmul.mubr.bf16.gmra.mrb[0].mxu0 %v44
    %v92 = vpop.f32.mrb[0].mxu0
    %v93 = vadd.f32 0.0, %v92
    %v94 = vpop.f32.mrb[0].mxu0
    %v95 = vpop.f32.mrb[0].mxu0
    %v96 = vadd.f32 0.0, %v95
    %v97 = vpop.f32.mrb[0].mxu0
    %98 = vdwg.mxu0
    %v99 = vpack.c.bf16 %v88, %v85
    %v100 = vpack.c.bf16 %v96, %v93
    %v103 = vunpack.c.l.b16 %v99
    %v104 = vunpack.c.h.b16 %v99
    %v105 = vunpack.c.l.b16 %v100
    %v106 = vunpack.c.h.b16 %v100
    %v107 = vpack.c.b16 %v103, %v103
    %v108 = vpack.c.b16 %v104, %v104
    %v109 = vpack.c.b16 %v105, %v105
    %v110 = vpack.c.b16 %v106, %v106
    %vm115 = vcmask 257024
    %116 = vst.msk [vmem:[#allocation2] sm:$0xf] %vm115, %v107
    %117 = vst.msk [vmem:[#allocation2 + $0x4] sm:$0xf] %vm115, %v108
    %118 = vst.msk [vmem:[#allocation2 + $0x8] sm:$0xf] %vm115, %v109
    %119 = vst.msk [vmem:[#allocation2 + $0xc] sm:$0xf] %vm115, %v110
    // Predicated region
    $region10: #{tpu_custom_call.1} parent=1 // pred_check
      _
    $region11: #{tpu_custom_call.1} parent=1 // pred_check_branch
      %121 = sbr.rel (0) target = $region13
    $region12: #{tpu_custom_call.1} parent=1 // pred_region
      %s123 = ssub.s32 256, 256
      %124 = vsyncadd [#allocation3], %s123
      %s125 = sshll.u32 [#allocation2], 4
      %s126 = int_to_ptr.vmem [resolvable:$true] %s125
      %131 = dma.vmem_to_hbm [thread:$0]  %s126, 256, %s2, [#allocation3], 64, 64, 4
    $region13: #{tpu_custom_call.1} parent=1 // pred_fallthru
      _
    // Predicated region
    $region14: #{tpu_custom_call.1} parent=1 // pred_check
      _
    $region15: #{tpu_custom_call.1} parent=1 // pred_check_branch
      %133 = sbr.rel (0) target = $region17
    $region16: #{tpu_custom_call.1} parent=1 // pred_region
      %134 = dma.done [#allocation3], 256
    $region17: #{tpu_custom_call.1} parent=1 // pred_fallthru
      _
    %135 = vsyncpa [#allocation3], 1

</llo_original>
